<compile_context>
chip_gen: v6e
topology: v6e:2x2x1
jax: 0.10.0
libtpu: 0.0.40
codegen_flags: <defaults>
</compile_context>

<pallas_src>
import jax
import jax.numpy as jnp
from jax.experimental import pallas as pl
from jax.experimental.pallas import tpu as pltpu


def _round_up(x, m):
    return ((x + m - 1) // m) * m


def svd_kernel(mean_ref, u_ref, i_ref, bias_ref, out_ref):
    # (E, TB) elementwise product on the VPU, sublane reduce over E on the XLU,
    # lane-dense bias + mean add, single unmasked (1, TB) store.
    prod = u_ref[...] * i_ref[...]                         # (E, TB) f32
    dot = jnp.sum(prod, axis=0, keepdims=True)             # (1, TB) f32
    out_ref[...] = dot + bias_ref[...] + mean_ref[0, 0]    # (1, TB) lane-dense


def svd_forward(params, u_id, i_id, *, block_b=512):
    """block_b: batch tile (lanes per grid step); rounded to a multiple of 128 and
    capped at the padded batch. Sweep 512-2048 for large batches (VMEM per step is
    2 * E * tile * 4 B double-buffered, tiny for typical E)."""
    user_emb, item_emb, user_bias, item_bias, mean = params
    B = u_id.shape[0]
    E = user_emb.shape[1]

    # Lane-dense tile: multiple of 128, no larger than the padded batch.
    tile = max(128, _round_up(block_b, 128))
    tile = min(tile, _round_up(B, 128))
    B_pad = _round_up(B, tile)

    # Glue (layout plumbing only, XLA fuses it): gather table rows, transpose so batch
    # is on lanes, and fold the two lane-width-1 bias streams into one (1, B) row.
    # TODO(synk): for huge tables, fuse the embedding gather into the kernel
    # (scalar-prefetch ids + batched DMA gather from pl.ANY tables); per-row DMAs are
    # only E*4 bytes, so rows must be batched per DMA to be worthwhile.
    u_t = user_emb[u_id].T                                        # (E, B)
    i_t = item_emb[i_id].T                                        # (E, B)
    bias = (user_bias[u_id, 0] + item_bias[i_id, 0])[None, :]     # (1, B)
    mean2d = mean.reshape(1, 1)                                   # (1, 1) SMEM scalar

    pad = B_pad - B
    if pad:
        u_t = jnp.pad(u_t, ((0, 0), (0, pad)))
        i_t = jnp.pad(i_t, ((0, 0), (0, pad)))
        bias = jnp.pad(bias, ((0, 0), (0, pad)))

    grid = (B_pad // tile,)
    out = pl.pallas_call(
        svd_kernel,
        out_shape=jax.ShapeDtypeStruct((1, B_pad), jnp.float32),
        grid_spec=pltpu.PrefetchScalarGridSpec(
            num_scalar_prefetch=0,
            grid=grid,
            in_specs=[
                pl.BlockSpec(memory_space=pltpu.MemorySpace.SMEM),   # mean (1, 1)
                pl.BlockSpec((E, tile), lambda b: (0, b)),           # user emb (E, tile)
                pl.BlockSpec((E, tile), lambda b: (0, b)),           # item emb (E, tile)
                pl.BlockSpec((1, tile), lambda b: (0, b)),           # merged bias (1, tile)
            ],
            out_specs=pl.BlockSpec((1, tile), lambda b: (0, b)),
        ),
        compiler_params=pltpu.CompilerParams(dimension_semantics=("parallel",)),
    )(mean2d, u_t, i_t, bias)
    return out[0, :B]                                      # (B,), matches torch .squeeze()


def init_params(key, num_users, num_items, mean, embedding_size):
    k1, k2, k3, k4 = jax.random.split(key, 4)
    user_emb = jax.random.uniform(k1, (num_users, embedding_size),
                                  jnp.float32, minval=0.0, maxval=0.005)
    item_emb = jax.random.uniform(k2, (num_items, embedding_size),
                                  jnp.float32, minval=0.0, maxval=0.005)
    user_bias = jax.random.uniform(k3, (num_users, 1),
                                   jnp.float32, minval=-0.01, maxval=0.01)
    item_bias = jax.random.uniform(k4, (num_items, 1),
                                   jnp.float32, minval=-0.01, maxval=0.01)
    mean_p = jnp.array([mean], dtype=jnp.float32)          # non-trainable nn.Parameter
    return user_emb, item_emb, user_bias, item_bias, mean_p


def svd_reference(params, u_id, i_id):
    user_emb, item_emb, user_bias, item_bias, mean = params
    u = user_emb[u_id]
    i = item_emb[i_id]
    b_u = user_bias[u_id][:, 0]
    b_i = item_bias[i_id][:, 0]
    return jnp.sum(u * i, axis=1) + b_u + b_i + mean


if __name__ == "__main__":
    num_users, num_items, embedding_size = 64, 96, 32
    mean_rating = 3.5
    batch = 8

    key = jax.random.PRNGKey(0)
    kp, ku, ki = jax.random.split(key, 3)
    params = init_params(kp, num_users, num_items, mean_rating, embedding_size)

    u_id = jax.random.randint(ku, (batch,), 0, num_users, dtype=jnp.int32)
    i_id = jax.random.randint(ki, (batch,), 0, num_items, dtype=jnp.int32)

    out = svd_forward(params, u_id, i_id)
    out = jax.block_until_ready(out)

    ref = svd_reference(params, u_id, i_id)
    assert out.shape == (batch,) and out.dtype == jnp.float32
    assert jnp.allclose(out, ref, atol=1e-6, rtol=1e-6), (out, ref)

    print("KERNEL_OK")
</pallas_src>

<mosaic_0001>
module attributes {stable_mosaic.version = 11 : i64} {
  func.func @svd_kernel(%arg0: i32, %arg1: memref<1x1xf32, #tpu.memory_space<smem>>, %arg2: memref<32x128xf32, #tpu.memory_space<vmem>>, %arg3: memref<32x128xf32, #tpu.memory_space<vmem>>, %arg4: memref<1x128xf32, #tpu.memory_space<vmem>>, %arg5: memref<1x128xf32, #tpu.memory_space<vmem>>) attributes {dimension_semantics = [#tpu.dimension_semantics<parallel>], iteration_bounds = array<i64: 1>, scalar_prefetch = 0 : i64, scratch_operands = 0 : i64, tpu.core_type = #tpu.core_type<tc>, window_params = [{transform_indices = @transform_0, window_bounds = array<i64: 1, 1>}, {transform_indices = @transform_1, window_bounds = array<i64: 32, 128>}, {transform_indices = @transform_2, window_bounds = array<i64: 32, 128>}, {transform_indices = @transform_3, window_bounds = array<i64: 1, 128>}, {transform_indices = @transform_4, window_bounds = array<i64: 1, 128>}]} {
    %c0 = arith.constant 0 : index
    %c0_0 = arith.constant 0 : index
    %0 = vector.load %arg2[%c0, %c0_0] : memref<32x128xf32, #tpu.memory_space<vmem>>, vector<32x128xf32>
    %c0_1 = arith.constant 0 : index
    %c0_2 = arith.constant 0 : index
    %1 = vector.load %arg3[%c0_1, %c0_2] : memref<32x128xf32, #tpu.memory_space<vmem>>, vector<32x128xf32>
    %2 = arith.mulf %0, %1 : vector<32x128xf32>
    %cst = arith.constant dense<0.000000e+00> : vector<128xf32>
    %3 = vector.multi_reduction <add>, %2, %cst [0] : vector<32x128xf32> to vector<128xf32>
    %4 = vector.shape_cast %3 : vector<128xf32> to vector<1x128xf32>
    %c0_3 = arith.constant 0 : index
    %c0_4 = arith.constant 0 : index
    %5 = vector.load %arg4[%c0_3, %c0_4] : memref<1x128xf32, #tpu.memory_space<vmem>>, vector<1x128xf32>
    %6 = arith.addf %4, %5 : vector<1x128xf32>
    %c0_5 = arith.constant 0 : index
    %c0_6 = arith.constant 0 : index
    %7 = memref.load %arg1[%c0_5, %c0_6] : memref<1x1xf32, #tpu.memory_space<smem>>
    %8 = vector.broadcast %7 : f32 to vector<1x128xf32>
    %9 = arith.addf %6, %8 : vector<1x128xf32>
    %c0_7 = arith.constant 0 : index
    %c0_8 = arith.constant 0 : index
    %10 = vector.load %arg5[%c0_7, %c0_8] : memref<1x128xf32, #tpu.memory_space<vmem>>, vector<1x128xf32>
    tpu.vector_store %arg5[%c0_7, %c0_8], %9 {strides = array<i32>} : memref<1x128xf32, #tpu.memory_space<vmem>>, vector<1x128xf32>,
    return
  }
  func.func @transform_0(%arg0: i32) -> (i32, i32) {
    %c0_i32 = arith.constant 0 : i32
    %c0_i32_0 = arith.constant 0 : i32
    %c0_i32_1 = arith.constant 0 : i32
    return %c0_i32, %c0_i32_0 : i32, i32
  }
  func.func @transform_1(%arg0: i32) -> (i32, i32) {
    %c0_i32 = arith.constant 0 : i32
    %c0_i32_0 = arith.constant 0 : i32
    return %c0_i32, %arg0 : i32, i32
  }
  func.func @transform_2(%arg0: i32) -> (i32, i32) {
    %c0_i32 = arith.constant 0 : i32
    %c0_i32_0 = arith.constant 0 : i32
    return %c0_i32, %arg0 : i32, i32
  }
  func.func @transform_3(%arg0: i32) -> (i32, i32) {
    %c0_i32 = arith.constant 0 : i32
    %c0_i32_0 = arith.constant 0 : i32
    return %c0_i32, %arg0 : i32, i32
  }
  func.func @transform_4(%arg0: i32) -> (i32, i32) {
    %c0_i32 = arith.constant 0 : i32
    %c0_i32_0 = arith.constant 0 : i32
    return %c0_i32, %arg0 : i32, i32
  }
}

</mosaic_0001>

<llo_original>
// kernel: tpu_custom_call.1
$region0: #{tpu_custom_call.1}
  #allocation0 [shape = 'u32[]', space=smem, size = 0x4, offset = 0x4, fixed_abs, tag = 'smem constant byte address 0x4 - core index']
  #allocation1 [shape = 'u32[144,128]{1,0:T(1,128)}', space=vmem, size = 0x12000, scoped, tag = 'internal scratch']
  #allocation2 [shape = 'f32[1,1]{1,0:T(1,128)S(6)}', space=smem, size = 0x200, scoped, tag = 'scoped memory for tpu_custom_call.1']
  %s0 = inlined_call_operand.<no memory space> [shape: f32[1,1], index: 0, kind: input, shape index: {}]
  %s1 = inlined_call_operand.hbm [shape: f32[32,128], index: 1, kind: input, shape index: {}]
  %s2 = inlined_call_operand.hbm [shape: f32[32,128], index: 2, kind: input, shape index: {}]
  %s3 = inlined_call_operand.vmem [shape: f32[1,128], index: 3, kind: input, shape index: {}]
  %s4 = inlined_call_operand.hbm [shape: f32[1,128], index: 4, kind: output, shape index: {}]
  %s5 = sld [smem:[#allocation0]]
  $region34: #{tpu_custom_call.1} parent=0
    _
  %s7 = ssub.s32 1, %s5
  %s8 = scalar_select 0, %s7, %s5
  %9 = sst [smem:[#allocation2]] %s0
  $region1: #{tpu_custom_call.1} parent=0
    #allocation3 [shape = 'u8[16384]{0}', space=vmem, size = 0x4000, scoped, tag = 'input window, operand 1, single buffered']
    #allocation4 [shape = 's32[1]{0}', space=sflag, size = 0x4, scoped, tag = 'scoped memory for tpu_custom_call.1']
    #allocation5 [shape = 's32[1]{0}', space=sflag, size = 0x4, scoped, tag = 'scoped memory for tpu_custom_call.1']
    #allocation6 [shape = 'u8[16384]{0}', space=vmem, size = 0x4000, scoped, tag = 'input window, operand 2, single buffered']
    #allocation7 [shape = 's32[1]{0}', space=sflag, size = 0x4, scoped, tag = 'scoped memory for tpu_custom_call.1']
    #allocation8 [shape = 'u8[512]{0}', space=vmem, size = 0x400, scoped, tag = 'output window, operand 0, single buffered']
    %10 = vsyncpa [#allocation4], 0
    %11 = vsyncpa [#allocation7], 0
    %12 = vsyncpa [#allocation5], 0
    // Predicated region
    $region2: #{tpu_custom_call.1} parent=1 // pred_check
      _
    $region3: #{tpu_custom_call.1} parent=1 // pred_check_branch
      %14 = sbr.rel (0) target = $region5
    $region4: #{tpu_custom_call.1} parent=1 // pred_region
      _
    $region5: #{tpu_custom_call.1} parent=1 // pred_fallthru
      _
    // Predicated region
    $region6: #{tpu_custom_call.1} parent=1 // pred_check
      _
    $region7: #{tpu_custom_call.1} parent=1 // pred_check_branch
      %16 = sbr.rel (0) target = $region9
    $region8: #{tpu_custom_call.1} parent=1 // pred_region
      %s18 = ssub.s32 512, 512
      %19 = vsyncadd [#allocation4], %s18
      %s20 = sshll.u32 [#allocation3], 4
      %s21 = int_to_ptr.vmem [resolvable:$true] %s20
      %26 = dma.hbm_to_vmem [thread:$0]  %s1, 512, %s21, [#allocation4], 128, 128, 8
    $region9: #{tpu_custom_call.1} parent=1 // pred_fallthru
      _
    // Predicated region
    $region10: #{tpu_custom_call.1} parent=1 // pred_check
      _
    $region11: #{tpu_custom_call.1} parent=1 // pred_check_branch
      %28 = sbr.rel (0) target = $region13
    $region12: #{tpu_custom_call.1} parent=1 // pred_region
      %s30 = ssub.s32 512, 512
      %31 = vsyncadd [#allocation7], %s30
      %s32 = sshll.u32 [#allocation6], 4
      %s33 = int_to_ptr.vmem [resolvable:$true] %s32
      %38 = dma.hbm_to_vmem [thread:$0]  %s2, 512, %s33, [#allocation7], 128, 128, 8
    $region13: #{tpu_custom_call.1} parent=1 // pred_fallthru
      _
    // Predicated region
    $region14: #{tpu_custom_call.1} parent=1 // pred_check
      _
    $region15: #{tpu_custom_call.1} parent=1 // pred_check_branch
      %40 = sbr.rel (0) target = $region17
    $region16: #{tpu_custom_call.1} parent=1 // pred_region
      _
    $region17: #{tpu_custom_call.1} parent=1 // pred_fallthru
      _
    // Predicated region
    $region18: #{tpu_custom_call.1} parent=1 // pred_check
      _
    $region19: #{tpu_custom_call.1} parent=1 // pred_check_branch
      %42 = sbr.rel (0) target = $region21
    $region20: #{tpu_custom_call.1} parent=1 // pred_region
      %43 = dma.done [#allocation4], 512
    $region21: #{tpu_custom_call.1} parent=1 // pred_fallthru
      _
    // Predicated region
    $region22: #{tpu_custom_call.1} parent=1 // pred_check
      _
    $region23: #{tpu_custom_call.1} parent=1 // pred_check_branch
      %45 = sbr.rel (0) target = $region25
    $region24: #{tpu_custom_call.1} parent=1 // pred_region
      %46 = dma.done [#allocation7], 512
    $region25: #{tpu_custom_call.1} parent=1 // pred_fallthru
      _
    %v47 = vld [vmem:[#allocation3] sm:$0xff]
    %v48 = vld [vmem:[#allocation3 + $0x8] sm:$0xff]
    %v49 = vld [vmem:[#allocation3 + $0x10] sm:$0xff]
    %v50 = vld [vmem:[#allocation3 + $0x18] sm:$0xff]
    %v51 = vld [vmem:[#allocation6] sm:$0xff]
    %v52 = vld [vmem:[#allocation6 + $0x8] sm:$0xff]
    %v53 = vld [vmem:[#allocation6 + $0x10] sm:$0xff]
    %v54 = vld [vmem:[#allocation6 + $0x18] sm:$0xff]
    %v55 = vmul.f32 %v47, %v51
    %v56 = vmul.f32 %v48, %v52
    %v57 = vmul.f32 %v49, %v53
    %v58 = vmul.f32 %v50, %v54
    %v59 = vadd.f32 %v55, %v56
    %v60 = vadd.f32 %v59, %v57
    %v61 = vadd.f32 %v60, %v58
    %v62 = vrot.slane %v61, 4
    %v63 = vadd.f32 %v61, %v62
    %v64 = vrot.slane %v63, 2
    %v65 = vadd.f32 %v63, %v64
    %v66 = vrot.slane %v65, 1
    %v67 = vadd.f32 %v65, %v66
    %v68 = vld [vmem:[%s3] sm:$0x1]
    %v69 = vadd.f32 %v67, %v68
    %s70 = sld [smem:[#allocation2]]
    %v71 = vstv %s70
    %v72 = vadd.f32 %v69, %v71
    %73 = vst [vmem:[#allocation8] sm:$0x1] %v72
    // Predicated region
    $region26: #{tpu_custom_call.1} parent=1 // pred_check
      _
    $region27: #{tpu_custom_call.1} parent=1 // pred_check_branch
      %75 = sbr.rel (0) target = $region29
    $region28: #{tpu_custom_call.1} parent=1 // pred_region
      %s77 = ssub.s32 16, 16
      %78 = vsyncadd [#allocation5], %s77
      %s80 = sshll.u32 [#allocation8], 4
      %s81 = int_to_ptr.vmem [resolvable:$true] %s80
      %83 = dma.vmem_to_hbm [thread:$0]  %s81, 16, %s4, [#allocation5]
    $region29: #{tpu_custom_call.1} parent=1 // pred_fallthru
      _
    // Predicated region
    $region30: #{tpu_custom_call.1} parent=1 // pred_check
      _
    $region31: #{tpu_custom_call.1} parent=1 // pred_check_branch
      %85 = sbr.rel (0) target = $region33
    $region32: #{tpu_custom_call.1} parent=1 // pred_region
      %86 = dma.done [#allocation5], 16
    $region33: #{tpu_custom_call.1} parent=1 // pred_fallthru
      _
    %87 = vsyncpa [#allocation4], 1
    %88 = vsyncpa [#allocation7], 1
    %89 = vsyncpa [#allocation5], 1

</llo_original>
